<compile_context>
chip_gen: v6e
topology: v6e:2x2x1
jax: 0.10.0
libtpu: 0.0.40
codegen_flags: <defaults>
</compile_context>

<pallas_src>
import functools

import jax
import jax.numpy as jnp
from jax.experimental import pallas as pl
from jax.experimental.pallas import tpu as pltpu


def _kd_loss_kernel(s_ref, t_ref, tgt_ref, loss_ref,
                    m_s_ref, d_s_ref, d_st_ref, s_tgt_ref,
                    m_t_ref, d_t_ref, a_t_ref, *,
                    alpha, temperature, n_total, c_total,
                    need_row_mask, need_col_mask):
    i = pl.program_id(0)            # batch row-block   ("parallel")
    j = pl.program_id(1)            # class column-block ("arbitrary" / reduction)
    nj = pl.num_programs(1)

    s = s_ref[...].astype(jnp.float32)          # [tn, tc] student logits
    t = t_ref[...].astype(jnp.float32)          # [tn, tc] teacher logits
    tn, tc = s.shape
    inv_t = 1.0 / temperature

    # global class index of every column in this block
    cls = j * tc + jax.lax.broadcasted_iota(jnp.int32, (tn, tc), 1)

    if need_col_mask:
        # Last class block may extend past C: push invalid columns to a large
        # negative (finite!) value so every exp() underflows to exactly 0 and
        # the 0 * s_t products stay finite.
        cvalid = cls < c_total
        s = jnp.where(cvalid, s, -1e30)
        t = jnp.where(cvalid, t, -1e30)

    @pl.when(j == 0)
    def _init():
        neg_inf = jnp.full(m_s_ref.shape, -jnp.inf, jnp.float32)
        zeros = jnp.zeros(d_s_ref.shape, jnp.float32)
        m_s_ref[...] = neg_inf
        m_t_ref[...] = neg_inf
        d_s_ref[...] = zeros
        d_st_ref[...] = zeros
        s_tgt_ref[...] = zeros
        d_t_ref[...] = zeros
        a_t_ref[...] = zeros

    # ---- student: online logsumexp at T=1 and at T=temperature -------------
    m_old = m_s_ref[...]                                           # [tn,1]
    m_new = jnp.maximum(m_old, jnp.max(s, axis=1, keepdims=True))  # [tn,1]
    d_s_ref[...] = (d_s_ref[...] * jnp.exp(m_old - m_new)
                    + jnp.sum(jnp.exp(s - m_new), axis=1, keepdims=True))
    s_t = s * inv_t
    m_new_t = m_new * inv_t          # max commutes with the positive 1/T scale
    d_st_ref[...] = (d_st_ref[...] * jnp.exp((m_old - m_new) * inv_t)
                     + jnp.sum(jnp.exp(s_t - m_new_t), axis=1, keepdims=True))
    m_s_ref[...] = m_new

    # ---- hard-label CE: accumulate s[target] via one-hot select ------------
    tgt = tgt_ref[...]                                             # [tn,1] i32
    s_tgt_ref[...] += jnp.sum(jnp.where(cls == tgt, s, 0.0),
                              axis=1, keepdims=True)

    # ---- teacher: online softmax numerator/denominator (never materialized)
    t_t = t * inv_t
    mt_old = m_t_ref[...]
    mt_new = jnp.maximum(mt_old, jnp.max(t_t, axis=1, keepdims=True))
    scale_t = jnp.exp(mt_old - mt_new)                             # [tn,1]
    e_t = jnp.exp(t_t - mt_new)                                    # [tn,tc]
    d_t_ref[...] = d_t_ref[...] * scale_t + jnp.sum(e_t, axis=1, keepdims=True)
    a_t_ref[...] = (a_t_ref[...] * scale_t
                    + jnp.sum(e_t * s_t, axis=1, keepdims=True))
    m_t_ref[...] = mt_new

    # ---- finalize this row block: per-row loss column -----------------------
    @pl.when(j == nj - 1)
    def _finalize():
        lse_s = jnp.log(d_s_ref[...]) + m_s_ref[...]               # lse(s)
        lse_st = jnp.log(d_st_ref[...]) + m_s_ref[...] * inv_t     # lse(s/T)
        ce = lse_s - s_tgt_ref[...]
        kd = lse_st - a_t_ref[...] / d_t_ref[...]
        loss = alpha * ce + (1.0 - alpha) * (temperature ** 2) * kd   # [tn,1]
        if need_row_mask:
            # only a [tn,1] compare+select, and only on the last class block
            row = i * tn + jax.lax.broadcasted_iota(jnp.int32, (tn, 1), 0)
            loss = jnp.where(row < n_total, loss, 0.0)
        loss_ref[...] = loss


def kd_loss(output_s, output_t, target, *, alpha=0.5, temperature=4.0,
            block_rows=None, block_cols=None):
    """Pallas implementation of KDLoss.forward with reduction='mean'.

    output_s / output_t may be f32 or bf16 in HBM (bf16 halves DMA bytes on
    bandwidth-bound chips); all math runs in f32 inside the kernel.
    If given, block_cols must be a multiple of 128 (or equal to C).
    """
    n, c = output_s.shape
    itemsize = jnp.dtype(output_s.dtype).itemsize

    # ---- generation-aware VMEM budget ---------------------------------------
    try:
        vmem_cap = int(pltpu.get_tpu_info().vmem_capacity_bytes)
    except Exception:
        vmem_cap = 64 * 1024 * 1024          # conservative (v7x per-TC size)
    # leave 1/4 of physical VMEM as compiler headroom:
    #   128 MiB (v5e/v6e) -> 96 MiB scoped limit,  64 MiB (v7x) -> 48 MiB.
    vmem_limit = (vmem_cap // 4) * 3
    avail = vmem_limit - 4 * 1024 * 1024     # scratch cols / sems / misc
    # bytes per (row, class) element:
    #   2 inputs x 2 pipeline buffers at HBM dtype  +  ~6 f32 full-tile temps
    per_elem = 4 * itemsize + 6 * 4
    max_elems = max(16 * 128, avail // per_elem)

    # ---- tile selection ------------------------------------------------------
    if block_cols is not None:
        tc = min(int(block_cols), c)
    elif 16 * c <= max_elems:
        tc = c                               # whole class axis in one block
    else:
        # class axis tiled: lane-dense multiples of 128, ~256-row blocks
        tc = max(128, min(c, (max_elems // 256) // 128 * 128))

    if block_rows is not None:
        tn = int(block_rows)
    else:
        tn = max_elems // tc
        tn = max(16, min(2048, (tn // 16) * 16))
    if n <= tn:
        tn = n                               # single row block == full batch

    nb = pl.cdiv(n, tn)
    nj = pl.cdiv(c, tc)
    need_row_mask = (n % tn != 0)
    need_col_mask = (c % tc != 0)

    tgt2d = target.astype(jnp.int32).reshape(n, 1)

    kernel = functools.partial(
        _kd_loss_kernel,
        alpha=float(alpha),
        temperature=float(temperature),
        n_total=n,
        c_total=c,
        need_row_mask=need_row_mask,
        need_col_mask=need_col_mask,
    )

    per_row_loss = pl.pallas_call(
        kernel,
        out_shape=jax.ShapeDtypeStruct((nb * tn, 1), jnp.float32),
        grid=(nb, nj),
        in_specs=[
            pl.BlockSpec((tn, tc), lambda i, j: (i, j)),   # student logits
            pl.BlockSpec((tn, tc), lambda i, j: (i, j)),   # teacher logits
            pl.BlockSpec((tn, 1), lambda i, j: (i, 0)),    # targets
        ],
        # per-row loss column, resident across the class (reduction) axis
        out_specs=pl.BlockSpec((tn, 1), lambda i, j: (i, 0)),
        scratch_shapes=[pltpu.VMEM((tn, 1), jnp.float32)] * 7,
        compiler_params=pltpu.CompilerParams(
            dimension_semantics=("parallel", "arbitrary"),
            vmem_limit_bytes=int(vmem_limit),
        ),
    )(output_s, output_t, tgt2d)

    # tiny (nb*tn, 1) reduction + mean in the wrapper (padded rows are 0)
    return jnp.sum(per_row_loss) * (1.0 / float(n))


def kd_loss_ref(output_s, output_t, target, *, alpha=0.5, temperature=4.0):
    """Pure-JAX reference mirroring the PyTorch forward."""
    s = output_s.astype(jnp.float32)
    t = output_t.astype(jnp.float32)
    log_probs = jax.nn.log_softmax(s, axis=1)
    ce = -jnp.take_along_axis(log_probs, target[:, None].astype(jnp.int32), axis=1)[:, 0]
    kd = -jax.nn.softmax(t / temperature, axis=1) * jax.nn.log_softmax(s / temperature, axis=1)
    kd = kd.sum(1)
    loss = alpha * ce + (1.0 - alpha) * temperature ** 2 * kd
    return loss.mean()


if __name__ == "__main__":
    # cfg-equivalent "parameters" (deterministic, set in-script)
    ALPHA = 0.5
    TEMPERATURE = 4.0

    key = jax.random.PRNGKey(0)

    # ---- test 1: small single-block case ----
    N, C = 8, 32
    k1, k2, k3 = jax.random.split(key, 3)
    output_s = jax.random.normal(k1, (N, C), dtype=jnp.float32)
    output_t = jax.random.normal(k2, (N, C), dtype=jnp.float32)
    target = jax.random.randint(k3, (N,), 0, C, dtype=jnp.int32)

    loss = kd_loss(output_s, output_t, target, alpha=ALPHA, temperature=TEMPERATURE)
    loss = jax.block_until_ready(loss)
    ref = kd_loss_ref(output_s, output_t, target, alpha=ALPHA, temperature=TEMPERATURE)
    assert jnp.allclose(loss, ref, rtol=1e-4, atol=1e-5), (loss, ref)

    # ---- test 2: multi row-block grid with a padded (masked) last block ----
    N2, C2 = 20, 32
    k4, k5, k6 = jax.random.split(jax.random.PRNGKey(1), 3)
    s2 = jax.random.normal(k4, (N2, C2), dtype=jnp.float32)
    t2 = jax.random.normal(k5, (N2, C2), dtype=jnp.float32)
    tgt2 = jax.random.randint(k6, (N2,), 0, C2, dtype=jnp.int32)

    loss2 = kd_loss(s2, t2, tgt2, alpha=ALPHA, temperature=TEMPERATURE, block_rows=8)
    loss2 = jax.block_until_ready(loss2)
    ref2 = kd_loss_ref(s2, t2, tgt2, alpha=ALPHA, temperature=TEMPERATURE)
    assert jnp.allclose(loss2, ref2, rtol=1e-4, atol=1e-5), (loss2, ref2)

    # ---- test 3: bf16 logits in HBM (halves DMA bytes), f32 math in-kernel ----
    s3 = output_s.astype(jnp.bfloat16)
    t3 = output_t.astype(jnp.bfloat16)
    loss3 = kd_loss(s3, t3, target, alpha=ALPHA, temperature=TEMPERATURE)
    loss3 = jax.block_until_ready(loss3)
    ref3 = kd_loss_ref(s3.astype(jnp.float32), t3.astype(jnp.float32), target,
                       alpha=ALPHA, temperature=TEMPERATURE)
    assert jnp.allclose(loss3, ref3, rtol=1e-4, atol=1e-5), (loss3, ref3)

    # ---- test 4: class axis tiled (online softmax across C blocks) ----
    N4, C4 = 16, 256
    k7, k8, k9 = jax.random.split(jax.random.PRNGKey(2), 3)
    s4 = jax.random.normal(k7, (N4, C4), dtype=jnp.float32)
    t4 = jax.random.normal(k8, (N4, C4), dtype=jnp.float32)
    tgt4 = jax.random.randint(k9, (N4,), 0, C4, dtype=jnp.int32)

    loss4 = kd_loss(s4, t4, tgt4, alpha=ALPHA, temperature=TEMPERATURE, block_cols=128)
    loss4 = jax.block_until_ready(loss4)
    ref4 = kd_loss_ref(s4, t4, tgt4, alpha=ALPHA, temperature=TEMPERATURE)
    assert jnp.allclose(loss4, ref4, rtol=1e-4, atol=1e-5), (loss4, ref4)

    print("KERNEL_OK")
</pallas_src>

<mosaic_0001>
module attributes {stable_mosaic.version = 11 : i64} {
  func.func @_kd_loss_kernel(%arg0: i32, %arg1: i32, %arg2: memref<8x32xf32, #tpu.memory_space<vmem>>, %arg3: memref<8x32xf32, #tpu.memory_space<vmem>>, %arg4: memref<8x1xi32, #tpu.memory_space<vmem>>, %arg5: memref<8x1xf32, #tpu.memory_space<vmem>>, %arg6: memref<8x1xf32, #tpu.memory_space<vmem>>, %arg7: memref<8x1xf32, #tpu.memory_space<vmem>>, %arg8: memref<8x1xf32, #tpu.memory_space<vmem>>, %arg9: memref<8x1xf32, #tpu.memory_space<vmem>>, %arg10: memref<8x1xf32, #tpu.memory_space<vmem>>, %arg11: memref<8x1xf32, #tpu.memory_space<vmem>>, %arg12: memref<8x1xf32, #tpu.memory_space<vmem>>) attributes {dimension_semantics = [#tpu.dimension_semantics<parallel>, #tpu.dimension_semantics<arbitrary>], iteration_bounds = array<i64: 1, 1>, scalar_prefetch = 0 : i64, scratch_operands = 7 : i64, tpu.core_type = #tpu.core_type<tc>, window_params = [{transform_indices = @transform_0, window_bounds = array<i64: 8, 32>}, {transform_indices = @transform_1, window_bounds = array<i64: 8, 32>}, {transform_indices = @transform_2, window_bounds = array<i64: 8, 1>}, {transform_indices = @transform_3, window_bounds = array<i64: 8, 1>}]} {
    %c0 = arith.constant 0 : index
    %c0_0 = arith.constant 0 : index
    %0 = vector.load %arg2[%c0, %c0_0] : memref<8x32xf32, #tpu.memory_space<vmem>>, vector<8x32xf32>
    %c0_1 = arith.constant 0 : index
    %c0_2 = arith.constant 0 : index
    %1 = vector.load %arg3[%c0_1, %c0_2] : memref<8x32xf32, #tpu.memory_space<vmem>>, vector<8x32xf32>
    %c32_i32 = arith.constant 32 : i32
    %2 = arith.muli %arg1, %c32_i32 : i32
    %3 = tpu.iota {dimensions = array<i32: 1>} : vector<8x32xi32>
    %4 = vector.broadcast %2 : i32 to vector<8x32xi32>
    %5 = arith.addi %4, %3 : vector<8x32xi32>
    %c0_i32 = arith.constant 0 : i32
    %6 = arith.cmpi eq, %arg1, %c0_i32 : i32
    %7 = arith.extui %6 : i1 to i32
    %c0_i32_3 = arith.constant 0 : i32
    %8 = arith.cmpi ne, %7, %c0_i32_3 : i32
    scf.if %8 {
      %cst_47 = arith.constant 0xFF800000 : f32
      %80 = vector.broadcast %cst_47 : f32 to vector<8x1xf32>
      %cst_48 = arith.constant 0.000000e+00 : f32
      %81 = vector.broadcast %cst_48 : f32 to vector<8x1xf32>
      %c0_49 = arith.constant 0 : index
      %c0_50 = arith.constant 0 : index
      %82 = vector.load %arg6[%c0_49, %c0_50] : memref<8x1xf32, #tpu.memory_space<vmem>>, vector<8x1xf32>
      tpu.vector_store %arg6[%c0_49, %c0_50], %80 {strides = array<i32>} : memref<8x1xf32, #tpu.memory_space<vmem>>, vector<8x1xf32>,
      %c0_51 = arith.constant 0 : index
      %c0_52 = arith.constant 0 : index
      %83 = vector.load %arg10[%c0_51, %c0_52] : memref<8x1xf32, #tpu.memory_space<vmem>>, vector<8x1xf32>
      tpu.vector_store %arg10[%c0_51, %c0_52], %80 {strides = array<i32>} : memref<8x1xf32, #tpu.memory_space<vmem>>, vector<8x1xf32>,
      %c0_53 = arith.constant 0 : index
      %c0_54 = arith.constant 0 : index
      %84 = vector.load %arg7[%c0_53, %c0_54] : memref<8x1xf32, #tpu.memory_space<vmem>>, vector<8x1xf32>
      tpu.vector_store %arg7[%c0_53, %c0_54], %81 {strides = array<i32>} : memref<8x1xf32, #tpu.memory_space<vmem>>, vector<8x1xf32>,
      %c0_55 = arith.constant 0 : index
      %c0_56 = arith.constant 0 : index
      %85 = vector.load %arg8[%c0_55, %c0_56] : memref<8x1xf32, #tpu.memory_space<vmem>>, vector<8x1xf32>
      tpu.vector_store %arg8[%c0_55, %c0_56], %81 {strides = array<i32>} : memref<8x1xf32, #tpu.memory_space<vmem>>, vector<8x1xf32>,
      %c0_57 = arith.constant 0 : index
      %c0_58 = arith.constant 0 : index
      %86 = vector.load %arg9[%c0_57, %c0_58] : memref<8x1xf32, #tpu.memory_space<vmem>>, vector<8x1xf32>
      tpu.vector_store %arg9[%c0_57, %c0_58], %81 {strides = array<i32>} : memref<8x1xf32, #tpu.memory_space<vmem>>, vector<8x1xf32>,
      %c0_59 = arith.constant 0 : index
      %c0_60 = arith.constant 0 : index
      %87 = vector.load %arg11[%c0_59, %c0_60] : memref<8x1xf32, #tpu.memory_space<vmem>>, vector<8x1xf32>
      tpu.vector_store %arg11[%c0_59, %c0_60], %81 {strides = array<i32>} : memref<8x1xf32, #tpu.memory_space<vmem>>, vector<8x1xf32>,
      %c0_61 = arith.constant 0 : index
      %c0_62 = arith.constant 0 : index
      %88 = vector.load %arg12[%c0_61, %c0_62] : memref<8x1xf32, #tpu.memory_space<vmem>>, vector<8x1xf32>
      tpu.vector_store %arg12[%c0_61, %c0_62], %81 {strides = array<i32>} : memref<8x1xf32, #tpu.memory_space<vmem>>, vector<8x1xf32>,
    } else {
    }
    %c0_4 = arith.constant 0 : index
    %c0_5 = arith.constant 0 : index
    %9 = vector.load %arg6[%c0_4, %c0_5] : memref<8x1xf32, #tpu.memory_space<vmem>>, vector<8x1xf32>
    %cst = arith.constant dense<0xFF800000> : vector<8xf32>
    %10 = vector.multi_reduction <maximumf>, %0, %cst [1] : vector<8x32xf32> to vector<8xf32>
    %11 = vector.shape_cast %10 : vector<8xf32> to vector<8x1xf32>
    %12 = arith.maximumf %9, %11 : vector<8x1xf32>
    %c0_6 = arith.constant 0 : index
    %c0_7 = arith.constant 0 : index
    %13 = vector.load %arg7[%c0_6, %c0_7] : memref<8x1xf32, #tpu.memory_space<vmem>>, vector<8x1xf32>
    %14 = arith.subf %9, %12 : vector<8x1xf32>
    %15 = math.exp %14 : vector<8x1xf32>
    %16 = arith.mulf %13, %15 : vector<8x1xf32>
    %17 = vector.broadcast %12 : vector<8x1xf32> to vector<8x32xf32>
    %18 = arith.subf %0, %17 : vector<8x32xf32>
    %19 = math.exp %18 : vector<8x32xf32>
    %cst_8 = arith.constant dense<0.000000e+00> : vector<8xf32>
    %20 = vector.multi_reduction <add>, %19, %cst_8 [1] : vector<8x32xf32> to vector<8xf32>
    %21 = vector.shape_cast %20 : vector<8xf32> to vector<8x1xf32>
    %22 = arith.addf %16, %21 : vector<8x1xf32>
    %c0_9 = arith.constant 0 : index
    %c0_10 = arith.constant 0 : index
    %23 = vector.load %arg7[%c0_9, %c0_10] : memref<8x1xf32, #tpu.memory_space<vmem>>, vector<8x1xf32>
    tpu.vector_store %arg7[%c0_9, %c0_10], %22 {strides = array<i32>} : memref<8x1xf32, #tpu.memory_space<vmem>>, vector<8x1xf32>,
    %cst_11 = arith.constant 2.500000e-01 : f32
    %24 = vector.broadcast %cst_11 : f32 to vector<8x32xf32>
    %25 = arith.mulf %0, %24 : vector<8x32xf32>
    %cst_12 = arith.constant 2.500000e-01 : f32
    %26 = vector.broadcast %cst_12 : f32 to vector<8x1xf32>
    %27 = arith.mulf %12, %26 : vector<8x1xf32>
    %c0_13 = arith.constant 0 : index
    %c0_14 = arith.constant 0 : index
    %28 = vector.load %arg8[%c0_13, %c0_14] : memref<8x1xf32, #tpu.memory_space<vmem>>, vector<8x1xf32>
    %29 = arith.subf %9, %12 : vector<8x1xf32>
    %cst_15 = arith.constant 2.500000e-01 : f32
    %30 = vector.broadcast %cst_15 : f32 to vector<8x1xf32>
    %31 = arith.mulf %29, %30 : vector<8x1xf32>
    %32 = math.exp %31 : vector<8x1xf32>
    %33 = arith.mulf %28, %32 : vector<8x1xf32>
    %34 = vector.broadcast %27 : vector<8x1xf32> to vector<8x32xf32>
    %35 = arith.subf %25, %34 : vector<8x32xf32>
    %36 = math.exp %35 : vector<8x32xf32>
    %cst_16 = arith.constant dense<0.000000e+00> : vector<8xf32>
    %37 = vector.multi_reduction <add>, %36, %cst_16 [1] : vector<8x32xf32> to vector<8xf32>
    %38 = vector.shape_cast %37 : vector<8xf32> to vector<8x1xf32>
    %39 = arith.addf %33, %38 : vector<8x1xf32>
    %c0_17 = arith.constant 0 : index
    %c0_18 = arith.constant 0 : index
    %40 = vector.load %arg8[%c0_17, %c0_18] : memref<8x1xf32, #tpu.memory_space<vmem>>, vector<8x1xf32>
    tpu.vector_store %arg8[%c0_17, %c0_18], %39 {strides = array<i32>} : memref<8x1xf32, #tpu.memory_space<vmem>>, vector<8x1xf32>,
    %c0_19 = arith.constant 0 : index
    %c0_20 = arith.constant 0 : index
    %41 = vector.load %arg6[%c0_19, %c0_20] : memref<8x1xf32, #tpu.memory_space<vmem>>, vector<8x1xf32>
    tpu.vector_store %arg6[%c0_19, %c0_20], %12 {strides = array<i32>} : memref<8x1xf32, #tpu.memory_space<vmem>>, vector<8x1xf32>,
    %c0_21 = arith.constant 0 : index
    %c0_22 = arith.constant 0 : index
    %42 = vector.load %arg4[%c0_21, %c0_22] : memref<8x1xi32, #tpu.memory_space<vmem>>, vector<8x1xi32>
    %c0_23 = arith.constant 0 : index
    %c0_24 = arith.constant 0 : index
    %43 = vector.load %arg9[%c0_23, %c0_24] : memref<8x1xf32, #tpu.memory_space<vmem>>, vector<8x1xf32>
    %44 = vector.broadcast %42 : vector<8x1xi32> to vector<8x32xi32>
    %45 = arith.cmpi eq, %5, %44 : vector<8x32xi32>
    %cst_25 = arith.constant 0.000000e+00 : f32
    %46 = vector.broadcast %cst_25 : f32 to vector<8x32xf32>
    %47 = arith.select %45, %0, %46 : vector<8x32xi1>, vector<8x32xf32>
    %cst_26 = arith.constant dense<0.000000e+00> : vector<8xf32>
    %48 = vector.multi_reduction <add>, %47, %cst_26 [1] : vector<8x32xf32> to vector<8xf32>
    %49 = vector.shape_cast %48 : vector<8xf32> to vector<8x1xf32>
    %50 = arith.addf %43, %49 : vector<8x1xf32>
    %c0_27 = arith.constant 0 : index
    %c0_28 = arith.constant 0 : index
    %51 = vector.load %arg9[%c0_27, %c0_28] : memref<8x1xf32, #tpu.memory_space<vmem>>, vector<8x1xf32>
    tpu.vector_store %arg9[%c0_27, %c0_28], %50 {strides = array<i32>} : memref<8x1xf32, #tpu.memory_space<vmem>>, vector<8x1xf32>,
    %cst_29 = arith.constant 2.500000e-01 : f32
    %52 = vector.broadcast %cst_29 : f32 to vector<8x32xf32>
    %53 = arith.mulf %1, %52 : vector<8x32xf32>
    %c0_30 = arith.constant 0 : index
    %c0_31 = arith.constant 0 : index
    %54 = vector.load %arg10[%c0_30, %c0_31] : memref<8x1xf32, #tpu.memory_space<vmem>>, vector<8x1xf32>
    %cst_32 = arith.constant dense<0xFF800000> : vector<8xf32>
    %55 = vector.multi_reduction <maximumf>, %53, %cst_32 [1] : vector<8x32xf32> to vector<8xf32>
    %56 = vector.shape_cast %55 : vector<8xf32> to vector<8x1xf32>
    %57 = arith.maximumf %54, %56 : vector<8x1xf32>
    %58 = arith.subf %54, %57 : vector<8x1xf32>
    %59 = math.exp %58 : vector<8x1xf32>
    %60 = vector.broadcast %57 : vector<8x1xf32> to vector<8x32xf32>
    %61 = arith.subf %53, %60 : vector<8x32xf32>
    %62 = math.exp %61 : vector<8x32xf32>
    %c0_33 = arith.constant 0 : index
    %c0_34 = arith.constant 0 : index
    %63 = vector.load %arg11[%c0_33, %c0_34] : memref<8x1xf32, #tpu.memory_space<vmem>>, vector<8x1xf32>
    %64 = arith.mulf %63, %59 : vector<8x1xf32>
    %cst_35 = arith.constant dense<0.000000e+00> : vector<8xf32>
    %65 = vector.multi_reduction <add>, %62, %cst_35 [1] : vector<8x32xf32> to vector<8xf32>
    %66 = vector.shape_cast %65 : vector<8xf32> to vector<8x1xf32>
    %67 = arith.addf %64, %66 : vector<8x1xf32>
    %c0_36 = arith.constant 0 : index
    %c0_37 = arith.constant 0 : index
    %68 = vector.load %arg11[%c0_36, %c0_37] : memref<8x1xf32, #tpu.memory_space<vmem>>, vector<8x1xf32>
    tpu.vector_store %arg11[%c0_36, %c0_37], %67 {strides = array<i32>} : memref<8x1xf32, #tpu.memory_space<vmem>>, vector<8x1xf32>,
    %c0_38 = arith.constant 0 : index
    %c0_39 = arith.constant 0 : index
    %69 = vector.load %arg12[%c0_38, %c0_39] : memref<8x1xf32, #tpu.memory_space<vmem>>, vector<8x1xf32>
    %70 = arith.mulf %69, %59 : vector<8x1xf32>
    %71 = arith.mulf %62, %25 : vector<8x32xf32>
    %cst_40 = arith.constant dense<0.000000e+00> : vector<8xf32>
    %72 = vector.multi_reduction <add>, %71, %cst_40 [1] : vector<8x32xf32> to vector<8xf32>
    %73 = vector.shape_cast %72 : vector<8xf32> to vector<8x1xf32>
    %74 = arith.addf %70, %73 : vector<8x1xf32>
    %c0_41 = arith.constant 0 : index
    %c0_42 = arith.constant 0 : index
    %75 = vector.load %arg12[%c0_41, %c0_42] : memref<8x1xf32, #tpu.memory_space<vmem>>, vector<8x1xf32>
    tpu.vector_store %arg12[%c0_41, %c0_42], %74 {strides = array<i32>} : memref<8x1xf32, #tpu.memory_space<vmem>>, vector<8x1xf32>,
    %c0_43 = arith.constant 0 : index
    %c0_44 = arith.constant 0 : index
    %76 = vector.load %arg10[%c0_43, %c0_44] : memref<8x1xf32, #tpu.memory_space<vmem>>, vector<8x1xf32>
    tpu.vector_store %arg10[%c0_43, %c0_44], %57 {strides = array<i32>} : memref<8x1xf32, #tpu.memory_space<vmem>>, vector<8x1xf32>,
    %c0_i32_45 = arith.constant 0 : i32
    %77 = arith.cmpi eq, %arg1, %c0_i32_45 : i32
    %78 = arith.extui %77 : i1 to i32
    %c0_i32_46 = arith.constant 0 : i32
    %79 = arith.cmpi ne, %78, %c0_i32_46 : i32
    scf.if %79 {
      %c0_47 = arith.constant 0 : index
      %c0_48 = arith.constant 0 : index
      %80 = vector.load %arg7[%c0_47, %c0_48] : memref<8x1xf32, #tpu.memory_space<vmem>>, vector<8x1xf32>
      %81 = math.log %80 : vector<8x1xf32>
      %c0_49 = arith.constant 0 : index
      %c0_50 = arith.constant 0 : index
      %82 = vector.load %arg6[%c0_49, %c0_50] : memref<8x1xf32, #tpu.memory_space<vmem>>, vector<8x1xf32>
      %83 = arith.addf %81, %82 : vector<8x1xf32>
      %c0_51 = arith.constant 0 : index
      %c0_52 = arith.constant 0 : index
      %84 = vector.load %arg8[%c0_51, %c0_52] : memref<8x1xf32, #tpu.memory_space<vmem>>, vector<8x1xf32>
      %85 = math.log %84 : vector<8x1xf32>
      %c0_53 = arith.constant 0 : index
      %c0_54 = arith.constant 0 : index
      %86 = vector.load %arg6[%c0_53, %c0_54] : memref<8x1xf32, #tpu.memory_space<vmem>>, vector<8x1xf32>
      %cst_55 = arith.constant 2.500000e-01 : f32
      %87 = vector.broadcast %cst_55 : f32 to vector<8x1xf32>
      %88 = arith.mulf %86, %87 : vector<8x1xf32>
      %89 = arith.addf %85, %88 : vector<8x1xf32>
      %c0_56 = arith.constant 0 : index
      %c0_57 = arith.constant 0 : index
      %90 = vector.load %arg9[%c0_56, %c0_57] : memref<8x1xf32, #tpu.memory_space<vmem>>, vector<8x1xf32>
      %91 = arith.subf %83, %90 : vector<8x1xf32>
      %c0_58 = arith.constant 0 : index
      %c0_59 = arith.constant 0 : index
      %92 = vector.load %arg12[%c0_58, %c0_59] : memref<8x1xf32, #tpu.memory_space<vmem>>, vector<8x1xf32>
      %c0_60 = arith.constant 0 : index
      %c0_61 = arith.constant 0 : index
      %93 = vector.load %arg11[%c0_60, %c0_61] : memref<8x1xf32, #tpu.memory_space<vmem>>, vector<8x1xf32>
      %94 = arith.divf %92, %93 : vector<8x1xf32>
      %95 = arith.subf %89, %94 : vector<8x1xf32>
      %cst_62 = arith.constant 5.000000e-01 : f32
      %96 = vector.broadcast %cst_62 : f32 to vector<8x1xf32>
      %97 = arith.mulf %96, %91 : vector<8x1xf32>
      %cst_63 = arith.constant 8.000000e+00 : f32
      %98 = vector.broadcast %cst_63 : f32 to vector<8x1xf32>
      %99 = arith.mulf %98, %95 : vector<8x1xf32>
      %100 = arith.addf %97, %99 : vector<8x1xf32>
      %c0_64 = arith.constant 0 : index
      %c0_65 = arith.constant 0 : index
      %101 = vector.load %arg5[%c0_64, %c0_65] : memref<8x1xf32, #tpu.memory_space<vmem>>, vector<8x1xf32>
      tpu.vector_store %arg5[%c0_64, %c0_65], %100 {strides = array<i32>} : memref<8x1xf32, #tpu.memory_space<vmem>>, vector<8x1xf32>,
    } else {
    }
    return
  }
  func.func @transform_0(%arg0: i32, %arg1: i32) -> (i32, i32) {
    %c0_i32 = arith.constant 0 : i32
    return %arg0, %arg1 : i32, i32
  }
  func.func @transform_1(%arg0: i32, %arg1: i32) -> (i32, i32) {
    %c0_i32 = arith.constant 0 : i32
    return %arg0, %arg1 : i32, i32
  }
  func.func @transform_2(%arg0: i32, %arg1: i32) -> (i32, i32) {
    %c0_i32 = arith.constant 0 : i32
    %c0_i32_0 = arith.constant 0 : i32
    return %arg0, %c0_i32 : i32, i32
  }
  func.func @transform_3(%arg0: i32, %arg1: i32) -> (i32, i32) {
    %c0_i32 = arith.constant 0 : i32
    %c0_i32_0 = arith.constant 0 : i32
    return %arg0, %c0_i32 : i32, i32
  }
}

</mosaic_0001>

<llo_original>
// kernel: tpu_custom_call.1
$region0: #{tpu_custom_call.1}
  #allocation0 [shape = 'u32[]', space=smem, size = 0x4, offset = 0x4, fixed_abs, tag = 'smem constant byte address 0x4 - core index']
  #allocation1 [shape = 'u32[144,128]{1,0:T(1,128)}', space=vmem, size = 0x12000, scoped, tag = 'internal scratch']
  #allocation2 [shape = 'f32[8,1]{1,0:T(8,128)}', space=vmem, size = 0x1000, scoped, tag = 'scratch operand']
  #allocation3 [shape = 'f32[8,1]{1,0:T(8,128)}', space=vmem, size = 0x1000, scoped, tag = 'scratch operand']
  #allocation4 [shape = 'f32[8,1]{1,0:T(8,128)}', space=vmem, size = 0x1000, scoped, tag = 'scratch operand']
  #allocation5 [shape = 'f32[8,1]{1,0:T(8,128)}', space=vmem, size = 0x1000, scoped, tag = 'scratch operand']
  #allocation6 [shape = 'f32[8,1]{1,0:T(8,128)}', space=vmem, size = 0x1000, scoped, tag = 'scratch operand']
  #allocation7 [shape = 'f32[8,1]{1,0:T(8,128)}', space=vmem, size = 0x1000, scoped, tag = 'scratch operand']
  #allocation8 [shape = 'f32[8,1]{1,0:T(8,128)}', space=vmem, size = 0x1000, scoped, tag = 'scratch operand']
  %s0 = inlined_call_operand.vmem [shape: f32[8,32], index: 0, kind: input, shape index: {}]
  %s1 = inlined_call_operand.hbm [shape: f32[8,32], index: 1, kind: input, shape index: {}]
  %s2 = inlined_call_operand.vmem [shape: s32[8,1], index: 2, kind: input, shape index: {}]
  %s3 = inlined_call_operand.vmem [shape: f32[8,1], index: 3, kind: output, shape index: {}]
  %s4 = sld [smem:[#allocation0]]
  $region34: #{tpu_custom_call.1} parent=0
    _
  %s6 = ssub.s32 1, %s4
  %s7 = scalar_select 0, %s6, %s4
  $region1: #{tpu_custom_call.1} parent=0
    #allocation9 [shape = 'u8[4096]{0}', space=vmem, size = 0x1000, scoped, tag = 'input window, operand 1, single buffered']
    #allocation10 [shape = 's32[1]{0}', space=sflag, size = 0x4, scoped, tag = 'scoped memory for tpu_custom_call.1']
    %8 = vsyncpa [#allocation10], 0
    // Predicated region
    $region2: #{tpu_custom_call.1} parent=1 // pred_check
      _
    $region3: #{tpu_custom_call.1} parent=1 // pred_check_branch
      %10 = sbr.rel (0) target = $region5
    $region4: #{tpu_custom_call.1} parent=1 // pred_region
      _
    $region5: #{tpu_custom_call.1} parent=1 // pred_fallthru
      _
    // Predicated region
    $region6: #{tpu_custom_call.1} parent=1 // pred_check
      _
    $region7: #{tpu_custom_call.1} parent=1 // pred_check_branch
      %12 = sbr.rel (0) target = $region9
    $region8: #{tpu_custom_call.1} parent=1 // pred_region
      %s14 = ssub.s32 128, 128
      %15 = vsyncadd [#allocation10], %s14
      %s17 = sshll.u32 [#allocation9], 4
      %s18 = int_to_ptr.vmem [resolvable:$true] %s17
      %20 = dma.hbm_to_vmem [thread:$0]  %s1, 128, %s18, [#allocation10]
    $region9: #{tpu_custom_call.1} parent=1 // pred_fallthru
      _
    // Predicated region
    $region10: #{tpu_custom_call.1} parent=1 // pred_check
      _
    $region11: #{tpu_custom_call.1} parent=1 // pred_check_branch
      %22 = sbr.rel (0) target = $region13
    $region12: #{tpu_custom_call.1} parent=1 // pred_region
      _
    $region13: #{tpu_custom_call.1} parent=1 // pred_fallthru
      _
    // Predicated region
    $region14: #{tpu_custom_call.1} parent=1 // pred_check
      _
    $region15: #{tpu_custom_call.1} parent=1 // pred_check_branch
      %24 = sbr.rel (0) target = $region17
    $region16: #{tpu_custom_call.1} parent=1 // pred_region
      %25 = dma.done [#allocation10], 128
    $region17: #{tpu_custom_call.1} parent=1 // pred_fallthru
      _
    %v26 = vld [vmem:[%s0] sm:$0xff]
    %v27 = vld [vmem:[#allocation9] sm:$0xff]
    %s28 = smul.u32 0, 32
    %v29 = vlaneseq
    %v30 = vand.u32 %v29, 127
    %v31 = vstv %s28
    %v32 = vadd.s32 %v31, %v30
    %p33 = scmp.eq.s32.totalorder 0, 0
    // Predicated region
    $region18: #{tpu_custom_call.1} parent=1 // pred_check
      %p34 = pneg %p33
    $region19: #{tpu_custom_call.1} parent=1 // pred_check_branch
      %36 = sbr.rel (%p34) target = $region21
    $region20: #{tpu_custom_call.1} parent=1 // pred_region
      %vm37 = vcmask 7168
      %38 = vst.msk [vmem:[#allocation2] sm:$0xff] %vm37, -inf
      %39 = vst.msk [vmem:[#allocation6] sm:$0xff] %vm37, -inf
      %40 = vst.msk [vmem:[#allocation3] sm:$0xff] %vm37, 0.0
      %41 = vst.msk [vmem:[#allocation4] sm:$0xff] %vm37, 0.0
      %42 = vst.msk [vmem:[#allocation5] sm:$0xff] %vm37, 0.0
      %43 = vst.msk [vmem:[#allocation7] sm:$0xff] %vm37, 0.0
      %44 = vst.msk [vmem:[#allocation8] sm:$0xff] %vm37, 0.0
    $region21: #{tpu_custom_call.1} parent=1 // pred_fallthru
      _
    %v45 = vld [vmem:[#allocation2] sm:$0xff]
    %vm46 = vcmask 261120
    %v47 = vsel %vm46, %v26, -inf
    %48 = vmax.xlane.f32.xlu0 %v47
    %v49 = vpop.xlane.xlu0 %48
    %v50 = vmax.f32 %v45, %v49
    %v51 = vld [vmem:[#allocation3] sm:$0xff]
    %v52 = vsub.f32 %v45, %v50
    %v53 = vmul.f32 %v52, 1.442695
    %v54 = vpow.pop %v53
    %v55 = vmul.f32 %v51, %v54
    %57 = vset.pattern.permute.xlu0 0
    %58 = vperm.xlu0 %57, %v50
    %v59 = vpop.permute.xlu0 %58
    %v61 = vsub.f32 %v26, %v59
    %v62 = vmul.f32 %v61, 1.442695
    %v63 = vpow.pop %v62
    %v64 = vsel %vm46, %v63, 0.0
    %65 = vadd.xlane.f32.xlu0 %v64
    %v66 = vpop.xlane.xlu0 %65
    %v67 = vadd.f32 %v55, %v66
    %vm68 = vcmask 7168
    %69 = vst.msk [vmem:[#allocation3] sm:$0xff] %vm68, %v67
    %v70 = vmul.f32 %v26, 0.25
    %v71 = vmul.f32 %v50, 0.25
    %v72 = vld [vmem:[#allocation4] sm:$0xff]
    %v73 = vmul.f32 %v52, 0.25
    %v74 = vmul.f32 %v73, 1.442695
    %v75 = vpow.pop %v74
    %v76 = vmul.f32 %v72, %v75
    %78 = vset.pattern.permute.xlu0 0
    %79 = vperm.xlu0 %78, %v71
    %v80 = vpop.permute.xlu0 %79
    %v82 = vsub.f32 %v70, %v80
    %v83 = vmul.f32 %v82, 1.442695
    %v84 = vpow.pop %v83
    %v85 = vsel %vm46, %v84, 0.0
    %86 = vadd.xlane.f32.xlu0 %v85
    %v87 = vpop.xlane.xlu0 %86
    %v88 = vadd.f32 %v76, %v87
    %89 = vst.msk [vmem:[#allocation4] sm:$0xff] %vm68, %v88
    %90 = vst.msk [vmem:[#allocation2] sm:$0xff] %vm68, %v50
    %v91 = vld [vmem:[%s2] sm:$0xff]
    %v92 = vld [vmem:[#allocation5] sm:$0xff]
    %93 = vset.pattern.permute.xlu0 0
    %94 = vperm.xlu0 %93, %v91
    %v95 = vpop.permute.xlu0 %94
    %vm96 = vcmp.eq.s32.totalorder %v32, %v95
    %v97 = vsel %vm96, %v26, 0.0
    %v98 = vsel %vm46, %v97, 0.0
    %99 = vadd.xlane.f32.xlu0 %v98
    %v100 = vpop.xlane.xlu0 %99
    %v101 = vadd.f32 %v92, %v100
    %102 = vst.msk [vmem:[#allocation5] sm:$0xff] %vm68, %v101
    %v103 = vmul.f32 %v27, 0.25
    %v104 = vld [vmem:[#allocation6] sm:$0xff]
    %v105 = vsel %vm46, %v103, -inf
    %106 = vmax.xlane.f32.xlu0 %v105
    %v107 = vpop.xlane.xlu0 %106
    %v108 = vmax.f32 %v104, %v107
    %v109 = vsub.f32 %v104, %v108
    %v110 = vmul.f32 %v109, 1.442695
    %v111 = vpow.pop %v110
    %113 = vset.pattern.permute.xlu0 0
    %114 = vperm.xlu0 %113, %v108
    %v115 = vpop.permute.xlu0 %114
    %v117 = vsub.f32 %v103, %v115
    %v118 = vmul.f32 %v117, 1.442695
    %v119 = vpow.pop %v118
    %v120 = vld [vmem:[#allocation7] sm:$0xff]
    %v121 = vmul.f32 %v120, %v111
    %v122 = vsel %vm46, %v119, 0.0
    %123 = vadd.xlane.f32.xlu0 %v122
    %v124 = vpop.xlane.xlu0 %123
    %v125 = vadd.f32 %v121, %v124
    %126 = vst.msk [vmem:[#allocation7] sm:$0xff] %vm68, %v125
    %v127 = vld [vmem:[#allocation8] sm:$0xff]
    %v128 = vmul.f32 %v127, %v111
    %v129 = vmul.f32 %v119, %v70
    %v130 = vsel %vm46, %v129, 0.0
    %131 = vadd.xlane.f32.xlu0 %v130
    %v132 = vpop.xlane.xlu0 %131
    %v133 = vadd.f32 %v128, %v132
    %134 = vst.msk [vmem:[#allocation8] sm:$0xff] %vm68, %v133
    %135 = vst.msk [vmem:[#allocation6] sm:$0xff] %vm68, %v108
    // Predicated region
    $region22: #{tpu_custom_call.1} parent=1 // pred_check
      %p136 = pneg %p33
    $region23: #{tpu_custom_call.1} parent=1 // pred_check_branch
      %138 = sbr.rel (%p136) target = $region25
    $region24: #{tpu_custom_call.1} parent=1 // pred_region
      %v139 = vld [vmem:[#allocation3] sm:$0xff]
      %v140 = vlog2.pop %v139
      %v141 = vmul.f32 %v140, 0.6931472
      %v142 = vld [vmem:[#allocation2] sm:$0xff]
      %v143 = vadd.f32 %v141, %v142
      %v144 = vld [vmem:[#allocation4] sm:$0xff]
      %v145 = vlog2.pop %v144
      %v146 = vmul.f32 %v145, 0.6931472
      %v147 = vmul.f32 %v142, 0.25
      %v148 = vadd.f32 %v146, %v147
      %v149 = vld [vmem:[#allocation5] sm:$0xff]
      %v150 = vsub.f32 %v143, %v149
      %v151 = vld [vmem:[#allocation8] sm:$0xff]
      %v152 = vld [vmem:[#allocation7] sm:$0xff]
      %v153 = vrcp.pop %v152
      %v154 = vmul.f32 %v151, %v153
      %v155 = vsub.f32 %v148, %v154
      %v156 = vmul.f32 %v150, 0.5
      %v157 = vmul.f32 %v155, 8.0
      %v158 = vadd.f32 %v156, %v157
      %159 = vst.msk [vmem:[%s3] sm:$0xff] %vm68, %v158
    $region25: #{tpu_custom_call.1} parent=1 // pred_fallthru
      _
    // Predicated region
    $region26: #{tpu_custom_call.1} parent=1 // pred_check
      _
    $region27: #{tpu_custom_call.1} parent=1 // pred_check_branch
      %161 = sbr.rel (0) target = $region29
    $region28: #{tpu_custom_call.1} parent=1 // pred_region
      _
    $region29: #{tpu_custom_call.1} parent=1 // pred_fallthru
      _
    // Predicated region
    $region30: #{tpu_custom_call.1} parent=1 // pred_check
      _
    $region31: #{tpu_custom_call.1} parent=1 // pred_check_branch
      %163 = sbr.rel (0) target = $region33
    $region32: #{tpu_custom_call.1} parent=1 // pred_region
      _
    $region33: #{tpu_custom_call.1} parent=1 // pred_fallthru
      _
    %164 = vsyncpa [#allocation10], 1

</llo_original>
